<compile_context>
chip_gen: v7x
topology: tpu7x:2x2x1
jax: 0.10.0
libtpu: 0.0.40
codegen_flags: <defaults>
</compile_context>

<pallas_src>
import jax
import jax.numpy as jnp
from jax import lax
from jax.experimental import pallas as pl
from jax.experimental.pallas import tpu as pltpu

_OUT_SLAB = (1, 8, 128)
_OUT_SLAB_ELEMS = 8 * 128  # power of two -> exact pre-scaling


def _vmem_plan():
    """Return (per-buffer pred budget bytes, vmem_limit_bytes), generation-aware."""
    cap = None
    try:
        cap = getattr(pltpu.get_tpu_info(), "vmem_capacity_bytes", None)
    except Exception:
        cap = None
    if cap is None or cap <= 64 * 1024 * 1024:
        # v7x-class (64 MiB / TensorCore) or unknown: stay conservative.
        return 10 * 1024 * 1024, 48 * 1024 * 1024
    # v5e / v6e: 128 MiB physical VMEM -> use a big chunk of it.
    return 16 * 1024 * 1024, 96 * 1024 * 1024


def _make_ce_tile_kernel(n_total, tile_n):
    """Kernel closure over the static true batch size (for remainder masking)."""

    def kernel(pred_ref, target_ref, out_ref):
        i = pl.program_id(0)

        x = pred_ref[...]                            # (tile_n, C), native dtype
        tgt = target_ref[...]                        # (tile_n, 1) int32
        tn, c = x.shape

        # Row-validity mask for the last-tile remainder (rows >= N are garbage).
        row_ids = lax.broadcasted_iota(jnp.int32, (tn, 1), 0) + i * tile_n
        valid = row_ids < n_total                    # (tile_n, 1) bool

        # Numerically-stable logsumexp pieces. max/sub stay in native dtype
        # (bf16-native VPU on v6e/v7x); exp/sum/log run in f32.
        row_max = jnp.max(x, axis=-1, keepdims=True)                 # (tile_n, 1)
        sumexp = jnp.sum(jnp.exp((x - row_max).astype(jnp.float32)),
                         axis=-1, keepdims=True)                     # f32

        # Gather the target logit via one-hot select on the raw tile.
        col_ids = lax.broadcasted_iota(jnp.int32, (tn, c), 1)
        onehot = col_ids == tgt
        picked = jnp.sum(jnp.where(onehot, x, jnp.zeros_like(x)).astype(jnp.float32),
                         axis=-1, keepdims=True)                     # (tile_n, 1)

        # lse - picked == log(sumexp) - (picked - row_max)
        per_example = jnp.log(sumexp) - (picked - row_max.astype(jnp.float32))
        # Load-bearing mask: discards NaN/Inf from out-of-bounds remainder rows.
        per_example = jnp.where(valid, per_example, 0.0)

        # Pre-scale by 1/(8*128) (exact, power of two) so the wrapper can do a
        # plain dense reduce of the whole slab.
        partial = jnp.sum(per_example) * (1.0 / _OUT_SLAB_ELEMS)
        out_ref[...] = jnp.full(_OUT_SLAB, partial, dtype=jnp.float32)

    return kernel


def cross_entropy_loss(pred, target, trans_feat=None, *, tile_n=None):
    """Pallas equivalent of get_loss().forward(pred, target, trans_feat)."""
    del trans_feat  # unused by the reference module
    n, c = pred.shape
    itemsize = jnp.dtype(pred.dtype).itemsize

    per_buf_budget, vmem_limit = _vmem_plan()

    n_pad8 = ((n + 7) // 8) * 8
    if tile_n is None:
        # Size the tile purely from the double-buffered pred budget.
        tile_n = per_buf_budget // (2 * c * itemsize)
        tile_n = (tile_n // 8) * 8
        # Keep >= 2 parallel grid steps when possible (v7x has 2 TensorCores).
        if n_pad8 >= 16:
            half = ((pl.cdiv(n, 2) + 7) // 8) * 8
            tile_n = min(tile_n, half)
    tile_n = max(8, (int(tile_n) // 8) * 8)
    tile_n = min(tile_n, n_pad8)

    num_tiles = pl.cdiv(n, tile_n)
    target2d = target.astype(jnp.int32).reshape(n, 1)

    kernel = _make_ce_tile_kernel(n, tile_n)

    partials = pl.pallas_call(
        kernel,
        out_shape=jax.ShapeDtypeStruct((num_tiles,) + _OUT_SLAB[1:], jnp.float32),
        grid_spec=pltpu.PrefetchScalarGridSpec(
            num_scalar_prefetch=0,
            grid=(num_tiles,),
            in_specs=[
                pl.BlockSpec((tile_n, c), lambda i: (i, 0)),
                pl.BlockSpec((tile_n, 1), lambda i: (i, 0)),
            ],
            out_specs=pl.BlockSpec(_OUT_SLAB, lambda i: (i, 0, 0)),
        ),
        compiler_params=pltpu.CompilerParams(
            dimension_semantics=("parallel",),
            vmem_limit_bytes=vmem_limit,
        ),
    )(pred, target2d)

    # Dense reduce of the whole slab (no strided [:,0,0] gather), then mean.
    # Note: N == 0 yields NaN (division by zero), matching torch's mean-of-empty.
    return jnp.sum(partials) / jnp.float32(n)


def _reference_loss(pred, target):
    # Pure-JAX reference (same math as torch nn.CrossEntropyLoss, mean).
    logp = jax.nn.log_softmax(pred.astype(jnp.float32), axis=-1)
    n = pred.shape[0]
    picked = logp[jnp.arange(n), target.astype(jnp.int32)]
    return -jnp.mean(picked)


if __name__ == "__main__":
    key = jax.random.PRNGKey(0)
    k_pred, k_tgt, k_feat = jax.random.split(key, 3)

    N, C = 20, 32  # small batch of logits, 32 classes (N not a multiple of 8)
    pred = jax.random.normal(k_pred, (N, C), dtype=jnp.float32)
    target = jax.random.randint(k_tgt, (N,), 0, C, dtype=jnp.int32)
    # trans_feat is accepted but unused (as in the PyTorch module).
    trans_feat = jax.random.normal(k_feat, (N, 3, 3), dtype=jnp.float32)

    ref = _reference_loss(pred, target)

    # Default (auto) tile size — VMEM-budget tiling with >= 2 parallel tiles.
    loss = jax.block_until_ready(cross_entropy_loss(pred, target, trans_feat))
    assert jnp.allclose(loss, ref, atol=1e-5, rtol=1e-5), (loss, ref)

    # Multi-tile path (grid=3) exercising the parallel grid + remainder mask.
    loss2 = jax.block_until_ready(
        cross_entropy_loss(pred, target, trans_feat, tile_n=8))
    assert jnp.allclose(loss2, ref, atol=1e-5, rtol=1e-5), (loss2, ref)

    # bf16 input path: native dtype through max/sub/select, f32 exp/sum/log.
    pred_bf16 = pred.astype(jnp.bfloat16)
    loss3 = jax.block_until_ready(cross_entropy_loss(pred_bf16, target))
    ref3 = _reference_loss(pred_bf16.astype(jnp.float32), target)
    assert jnp.allclose(loss3, ref3, atol=2e-2, rtol=2e-2), (loss3, ref3)

    print("KERNEL_OK")
</pallas_src>

<mosaic_0001>
module attributes {stable_mosaic.version = 11 : i64} {
  func.func @kernel(%arg0: i32, %arg1: memref<16x32xf32, #tpu.memory_space<vmem>>, %arg2: memref<16x1xi32, #tpu.memory_space<vmem>>, %arg3: memref<1x8x128xf32, #tpu.memory_space<vmem>>) attributes {dimension_semantics = [#tpu.dimension_semantics<parallel>], iteration_bounds = array<i64: 2>, scalar_prefetch = 0 : i64, scratch_operands = 0 : i64, tpu.core_type = #tpu.core_type<tc>, window_params = [{transform_indices = @transform_0, window_bounds = array<i64: 16, 32>}, {transform_indices = @transform_1, window_bounds = array<i64: 16, 1>}, {transform_indices = @transform_2, window_bounds = array<i64: 1, 8, 128>}]} {
    %c0 = arith.constant 0 : index
    %c0_0 = arith.constant 0 : index
    %0 = vector.load %arg1[%c0, %c0_0] : memref<16x32xf32, #tpu.memory_space<vmem>>, vector<16x32xf32>
    %c0_1 = arith.constant 0 : index
    %c0_2 = arith.constant 0 : index
    %1 = vector.load %arg2[%c0_1, %c0_2] : memref<16x1xi32, #tpu.memory_space<vmem>>, vector<16x1xi32>
    %2 = tpu.iota {dimensions = array<i32: 0>} : vector<16x1xi32>
    %c16_i32 = arith.constant 16 : i32
    %3 = arith.muli %arg0, %c16_i32 : i32
    %4 = vector.broadcast %3 : i32 to vector<16x1xi32>
    %5 = arith.addi %2, %4 : vector<16x1xi32>
    %c20_i32 = arith.constant 20 : i32
    %6 = vector.broadcast %c20_i32 : i32 to vector<16x1xi32>
    %7 = arith.cmpi slt, %5, %6 : vector<16x1xi32>
    %cst = arith.constant dense<0xFF800000> : vector<16xf32>
    %8 = vector.multi_reduction <maximumf>, %0, %cst [1] : vector<16x32xf32> to vector<16xf32>
    %9 = vector.shape_cast %8 : vector<16xf32> to vector<16x1xf32>
    %10 = vector.broadcast %9 : vector<16x1xf32> to vector<16x32xf32>
    %11 = arith.subf %0, %10 : vector<16x32xf32>
    %12 = math.exp %11 : vector<16x32xf32>
    %cst_3 = arith.constant dense<0.000000e+00> : vector<16xf32>
    %13 = vector.multi_reduction <add>, %12, %cst_3 [1] : vector<16x32xf32> to vector<16xf32>
    %14 = vector.shape_cast %13 : vector<16xf32> to vector<16x1xf32>
    %15 = tpu.iota {dimensions = array<i32: 1>} : vector<16x32xi32>
    %16 = vector.broadcast %1 : vector<16x1xi32> to vector<16x32xi32>
    %17 = arith.cmpi eq, %15, %16 : vector<16x32xi32>
    %cst_4 = arith.constant 0.000000e+00 : f32
    %18 = vector.broadcast %cst_4 : f32 to vector<16x32xf32>
    %19 = arith.select %17, %0, %18 : vector<16x32xi1>, vector<16x32xf32>
    %cst_5 = arith.constant dense<0.000000e+00> : vector<16xf32>
    %20 = vector.multi_reduction <add>, %19, %cst_5 [1] : vector<16x32xf32> to vector<16xf32>
    %21 = vector.shape_cast %20 : vector<16xf32> to vector<16x1xf32>
    %22 = math.log %14 : vector<16x1xf32>
    %23 = arith.subf %21, %9 : vector<16x1xf32>
    %24 = arith.subf %22, %23 : vector<16x1xf32>
    %cst_6 = arith.constant 0.000000e+00 : f32
    %25 = vector.broadcast %cst_6 : f32 to vector<16x1xf32>
    %26 = arith.select %7, %24, %25 : vector<16x1xi1>, vector<16x1xf32>
    %27 = vector.shape_cast %26 : vector<16x1xf32> to vector<1x16x1xf32>
    %cst_7 = arith.constant dense<0.000000e+00> : vector<1xf32>
    %28 = vector.multi_reduction <add>, %27, %cst_7 [1, 2] : vector<1x16x1xf32> to vector<1xf32>
    %29 = vector.shape_cast %28 : vector<1xf32> to vector<1x1x1xf32>
    %30 = vector.extract %29[0, 0, 0] : f32 from vector<1x1x1xf32>
    %cst_8 = arith.constant 9.765625E-4 : f32
    %31 = arith.mulf %30, %cst_8 : f32
    %32 = vector.broadcast %31 : f32 to vector<1x8x128xf32>
    %c0_9 = arith.constant 0 : index
    %c0_10 = arith.constant 0 : index
    %c0_11 = arith.constant 0 : index
    %33 = vector.load %arg3[%c0_9, %c0_10, %c0_11] : memref<1x8x128xf32, #tpu.memory_space<vmem>>, vector<1x8x128xf32>
    tpu.vector_store %arg3[%c0_9, %c0_10, %c0_11], %32 {strides = array<i32>} : memref<1x8x128xf32, #tpu.memory_space<vmem>>, vector<1x8x128xf32>,
    return
  }
  func.func @transform_0(%arg0: i32) -> (i32, i32) {
    %c0_i32 = arith.constant 0 : i32
    %c0_i32_0 = arith.constant 0 : i32
    return %arg0, %c0_i32 : i32, i32
  }
  func.func @transform_1(%arg0: i32) -> (i32, i32) {
    %c0_i32 = arith.constant 0 : i32
    %c0_i32_0 = arith.constant 0 : i32
    return %arg0, %c0_i32 : i32, i32
  }
  func.func @transform_2(%arg0: i32) -> (i32, i32, i32) {
    %c0_i32 = arith.constant 0 : i32
    %c0_i32_0 = arith.constant 0 : i32
    %c0_i32_1 = arith.constant 0 : i32
    return %arg0, %c0_i32, %c0_i32_0 : i32, i32, i32
  }
}

</mosaic_0001>

<llo_original>
// kernel: tpu_custom_call.1
$region0: #{tpu_custom_call.1}
  #allocation0 [shape = 'u32[]', space=smem, size = 0x4, offset = 0x4, fixed_abs, tag = 'smem constant byte address 0x4 - core index']
  #allocation1 [shape = 'u32[144,128]{1,0:T(1,128)}', space=vmem, size = 0x12000, scoped, tag = 'internal scratch']
  %s0 = inlined_call_operand.vmem [shape: f32[20,32], index: 0, kind: input, shape index: {}]
  %s1 = inlined_call_operand.vmem [shape: s32[20,1], index: 1, kind: input, shape index: {}]
  %s2 = inlined_call_operand.hbm [shape: f32[2,8,128], index: 2, kind: output, shape index: {}]
  %s3 = sld [smem:[#allocation0]]
  $region41: #{tpu_custom_call.1} parent=0
    _
  %s5 = ssub.s32 1, %s3
  %s6 = scalar_select 0, %s5, %s3
  $region1: #{tpu_custom_call.1} parent=0
    #allocation2 [shape = 'u8[8192]{0}', space=vmem, size = 0x2000, scoped, tag = 'output window, operand 0']
    #allocation3 [shape = 's32[2]{0}', space=sflag, size = 0x8, scoped, tag = 'scoped memory for tpu_custom_call.1']
    %7 = vsyncpa [#allocation3], 0
    %s8 = scalar_lea.sflag [#allocation3], 1
    %9 = vsyncpa %s8, 0
    loop: start=0, step=1, limit=4
    $region2: #{tpu_custom_call.1} parent=1 // loop_pre_header
      _
    $region3: #{tpu_custom_call.1} parent=1 // loop_header
      %s11 = sphi 0, %s15
      %p12 = scmp.ge.s32.totalorder %s11, 4
      %s21 = sphi 0, %s23
      %s24 = sphi 0, %s21
      %s25 = sphi 0, %s24
      %s41 = sphi 0, %s25
      %s47 = sphi 0, %s49
      %s50 = sphi 0, %s47
      %s51 = sphi 0, %s50
      %s67 = sphi 0, %s51
      %s73 = sphi 0, %s75
      %s76 = sphi 0, %s73
      %s77 = sphi 0, %s76
      %s93 = sphi 0, %s77
    $region4: #{tpu_custom_call.1} parent=1 // loop_header_branch
      %14 = sbr.rel (%p12) target = $region8
    $region5: #{tpu_custom_call.1} parent=1 // loop_body
      %s16 = ssub.s32 %s11, 1
      %s17 = ssub.s32 %s11, 2
      %s18 = sadd.s32 %s11, 1
      %s19 = ssub.s32 %s11, %s18
      %p20 = scmp.eq.s32.totalorder %s19, 0
      %s22 = sadd.s32 %s21, 1
      %s23 = scalar_select %p20, %s21, %s22
      %p26 = pneg %p20
      %p27 = scmp.eq.s32.totalorder %s11, 1
      %p28 = por %p26, %p27
      %p29 = scmp.ne.s32.totalorder %s21, %s24
      %p30 = scmp.eq.s32.totalorder %s11, 0
      %p31 = por %p29, %p30
      %p32 = scmp.ne.s32.totalorder %s21, %s24
      %p33 = scmp.eq.s32.totalorder %s16, 1
      %p34 = por %p32, %p33
      %p35 = scmp.ne.s32.totalorder %s24, %s25
      %p36 = scmp.eq.s32.totalorder %s16, 0
      %p37 = por %p35, %p36
      %p38 = scmp.ne.s32.totalorder %s24, %s25
      %p39 = scmp.eq.s32.totalorder %s17, 1
      %p40 = por %p38, %p39
      %p42 = scmp.ne.s32.totalorder %s25, %s41
      %p43 = scmp.eq.s32.totalorder %s17, 0
      %p44 = por %p42, %p43
      %s45 = ssub.s32 %s11, %s18
      %p46 = scmp.eq.s32.totalorder %s45, 0
      %s48 = sadd.s32 %s47, 1
      %s49 = scalar_select %p46, %s47, %s48
      %p52 = pneg %p46
      %p53 = scmp.eq.s32.totalorder %s11, 1
      %p54 = por %p52, %p53
      %p55 = scmp.ne.s32.totalorder %s47, %s50
      %p56 = scmp.eq.s32.totalorder %s11, 0
      %p57 = por %p55, %p56
      %p58 = scmp.ne.s32.totalorder %s47, %s50
      %p59 = scmp.eq.s32.totalorder %s16, 1
      %p60 = por %p58, %p59
      %p61 = scmp.ne.s32.totalorder %s50, %s51
      %p62 = scmp.eq.s32.totalorder %s16, 0
      %p63 = por %p61, %p62
      %p64 = scmp.ne.s32.totalorder %s50, %s51
      %p65 = scmp.eq.s32.totalorder %s17, 1
      %p66 = por %p64, %p65
      %p68 = scmp.ne.s32.totalorder %s51, %s67
      %p69 = scmp.eq.s32.totalorder %s17, 0
      %p70 = por %p68, %p69
      %s71 = ssub.s32 %s11, %s18
      %p72 = scmp.eq.s32.totalorder %s71, 0
      %s74 = sadd.s32 %s73, 1
      %s75 = scalar_select %p72, %s73, %s74
      %p78 = pneg %p72
      %p79 = scmp.eq.s32.totalorder %s11, 1
      %p80 = por %p78, %p79
      %p81 = scmp.ne.s32.totalorder %s73, %s76
      %p82 = scmp.eq.s32.totalorder %s11, 0
      %p83 = por %p81, %p82
      %p84 = scmp.ne.s32.totalorder %s73, %s76
      %p85 = scmp.eq.s32.totalorder %s16, 1
      %p86 = por %p84, %p85
      %p87 = scmp.ne.s32.totalorder %s76, %s77
      %p88 = scmp.eq.s32.totalorder %s16, 0
      %p89 = por %p87, %p88
      %p90 = scmp.ne.s32.totalorder %s76, %s77
      %p91 = scmp.eq.s32.totalorder %s17, 1
      %p92 = por %p90, %p91
      %p94 = scmp.ne.s32.totalorder %s77, %s93
      %p95 = scmp.eq.s32.totalorder %s17, 0
      %p96 = por %p94, %p95
      %p97 = scmp.le.s32.totalorder 1, %s11
      %p98 = scmp.lt.s32.totalorder %s11, 3
      %p99 = pnand %p97, %p98
      %p100 = pneg %p99
      // Predicated region
      $region9: #{tpu_custom_call.1} parent=5 // pred_check
        _
      $region10: #{tpu_custom_call.1} parent=5 // pred_check_branch
        %102 = sbr.rel (%p99) target = $region12
      $region11: #{tpu_custom_call.1} parent=5 // pred_region
        %s103 = ssub.s32 %s11, 1
      $region12: #{tpu_custom_call.1} parent=5 // pred_fallthru
        _
      %p104 = scmp.lt.s32.totalorder %s11, 2
      // Predicated region
      $region13: #{tpu_custom_call.1} parent=5 // pred_check
        %p105 = pneg %p104
      $region14: #{tpu_custom_call.1} parent=5 // pred_check_branch
        %107 = sbr.rel (%p105) target = $region16
      $region15: #{tpu_custom_call.1} parent=5 // pred_region
        // Predicated region
        $region17: #{tpu_custom_call.1} parent=15 // pred_check
          %p108 = pneg %p31
        $region18: #{tpu_custom_call.1} parent=15 // pred_check_branch
          %110 = sbr.rel (%p108) target = $region20
        $region19: #{tpu_custom_call.1} parent=15 // pred_region
          %s111 = smul.u32 2, %s11
          %s112 = ssub.s32 3, %s111
          %p113 = scmp.lt.s32.totalorder %s112, 2
          %s114 = scalar_select %p113, %s112, 2
          %s115 = smul.u32 128, %s114
          %p116 = scmp.lt.s32.totalorder %s111, 2
          %s117 = scalar_select %p116, %s111, 2
          %s118 = smul.addr %s117, 8
          %s119 = scalar_lea.vmem %s0, %s118
          %s120 = smul.u32 2, %s11
          %s121 = ssub.s32 3, %s120
          %p122 = scmp.lt.s32.totalorder %s121, 2
          %s123 = scalar_select %p122, %s121, 2
          %s124 = smul.u32 128, %s123
        $region20: #{tpu_custom_call.1} parent=15 // pred_fallthru
          _
        // Predicated region
        $region21: #{tpu_custom_call.1} parent=15 // pred_check
          %p125 = pneg %p57
        $region22: #{tpu_custom_call.1} parent=15 // pred_check_branch
          %127 = sbr.rel (%p125) target = $region24
        $region23: #{tpu_custom_call.1} parent=15 // pred_region
          %s128 = smul.u32 2, %s11
          %s129 = ssub.s32 3, %s128
          %p130 = scmp.lt.s32.totalorder %s129, 2
          %s131 = scalar_select %p130, %s129, 2
          %s132 = smul.u32 128, %s131
          %p133 = scmp.lt.s32.totalorder %s128, 2
          %s134 = scalar_select %p133, %s128, 2
          %s135 = smul.addr %s134, 8
          %s136 = scalar_lea.vmem %s1, %s135
          %s137 = smul.u32 2, %s11
          %s138 = ssub.s32 3, %s137
          %p139 = scmp.lt.s32.totalorder %s138, 2
          %s140 = scalar_select %p139, %s138, 2
          %s141 = smul.u32 128, %s140
        $region24: #{tpu_custom_call.1} parent=15 // pred_fallthru
          _
      $region16: #{tpu_custom_call.1} parent=5 // pred_fallthru
        _
      %p142 = scmp.le.s32.totalorder 1, %s11
      %p143 = scmp.lt.s32.totalorder %s11, 3
      %p144 = pnand %p142, %p143
      %p145 = pneg %p144
      // Predicated region
      $region25: #{tpu_custom_call.1} parent=5 // pred_check
        _
      $region26: #{tpu_custom_call.1} parent=5 // pred_check_branch
        %147 = sbr.rel (%p144) target = $region28
      $region27: #{tpu_custom_call.1} parent=5 // pred_region
        %s148 = ssub.s32 %s11, 1
        %s149 = smul.u32 2, %s16
        %s150 = ssub.s32 3, %s149
        %p151 = scmp.lt.s32.totalorder %s150, 2
        %s152 = scalar_select %p151, %s150, 2
        %s153 = smul.u32 128, %s152
        %p154 = scmp.lt.s32.totalorder %s149, 2
        %s155 = scalar_select %p154, %s149, 2
        %s156 = smul.addr %s155, 8
        %s157 = scalar_lea.vmem %s0, %s156
        %p158 = pneg %p37
        %p159 = pneg %p34
        %s160 = smul.u32 2, %s16
        %s161 = ssub.s32 3, %s160
        %p162 = scmp.lt.s32.totalorder %s161, 2
        %s163 = scalar_select %p162, %s161, 2
        %s164 = smul.u32 128, %s163
        %p165 = scmp.lt.s32.totalorder %s160, 2
        %s166 = scalar_select %p165, %s160, 2
        %s167 = smul.addr %s166, 8
        %s168 = scalar_lea.vmem %s1, %s167
        %p169 = pneg %p63
        %p170 = pneg %p60
        %p171 = pneg %p89
        %p172 = pneg %p86
        %s173 = sand.u32 %s76, 1
        %s174 = scalar_lea.sflag [#allocation3], %s173
        %s175 = sand.u32 %s76, 1
        %s176 = smul.addr %s175, 8
        %s177 = scalar_lea.vmem [#allocation2], %s176
        %s178 = smul.u32 2, %s16
        %s179 = ssub.s32 3, %s178
        %p180 = scmp.lt.s32.totalorder %s179, 2
        %s181 = scalar_select %p180, %s179, 2
        %s182 = smul.u32 128, %s181
        %p183 = scmp.lt.s32.totalorder %s178, 2
        %s184 = scalar_select %p183, %s178, 2
        %s185 = smul.addr %s184, 8
        %s186 = scalar_lea.vmem %s0, %s185
        %s187 = smul.u32 2, %s16
        %s188 = ssub.s32 3, %s187
        %p189 = scmp.lt.s32.totalorder %s188, 2
        %s190 = scalar_select %p189, %s188, 2
        %s191 = smul.u32 128, %s190
        %s192 = smul.u32 2, %s16
        %s193 = ssub.s32 3, %s192
        %p194 = scmp.lt.s32.totalorder %s193, 2
        %s195 = scalar_select %p194, %s193, 2
        %s196 = smul.u32 128, %s195
        %p197 = scmp.lt.s32.totalorder %s192, 2
        %s198 = scalar_select %p197, %s192, 2
        %s199 = smul.addr %s198, 8
        %s200 = scalar_lea.vmem %s1, %s199
        %s201 = smul.u32 2, %s16
        %s202 = ssub.s32 3, %s201
        %p203 = scmp.lt.s32.totalorder %s202, 2
        %s204 = scalar_select %p203, %s202, 2
        %s205 = smul.u32 128, %s204
        %v206 = vld [vmem:[%s186] sm:$0xff]
        %v207 = vld [vmem:[%s186 + $0x8] sm:$0xff]
        %v208 = vld [vmem:[%s200] sm:$0xff]
        %v209 = vld [vmem:[%s200 + $0x8] sm:$0xff]
        %v210 = vlaneseq
        %v211 = vshrl.u32 %v210, 7
        %v212 = vadd.s32 %v211, 8
        %s213 = smul.u32 %s16, 16
        %v214 = vstv %s213
        %v215 = vadd.s32 %v211, %v214
        %v216 = vadd.s32 %v212, %v214
        %vm217 = vcmp.lt.s32.totalorder %v215, 20
        %vm218 = vcmp.lt.s32.totalorder %v216, 20
        %vm219 = vcmask 261120
        %v220 = vsel %vm219, %v206, -inf
        %221 = vmax.xlane.f32.xlu0 %v220
        %v222 = vpop.xlane.xlu0 %221
        %v223 = vsel %vm219, %v207, -inf
        %224 = vmax.xlane.f32.xlu0 %v223
        %v225 = vpop.xlane.xlu0 %224
        %v226 = vsub.f32 %v206, %v222
        %v227 = vsub.f32 %v207, %v225
        %v228 = vmul.f32 %v226, 1.442695
        %v229 = vpow.pop %v228
        %v230 = vmul.f32 %v227, 1.442695
        %v231 = vpow.pop %v230
        %v232 = vsel %vm219, %v229, 0.0
        %233 = vadd.xlane.f32.xlu0 %v232
        %v234 = vpop.xlane.xlu0 %233
        %v235 = vsel %vm219, %v231, 0.0
        %236 = vadd.xlane.f32.xlu0 %v235
        %v237 = vpop.xlane.xlu0 %236
        %v238 = vlaneseq
        %v239 = vand.u32 %v238, 127
        %240 = vset.pattern.permute.xlu0 0
        %241 = vperm.xlu0 %240, %v208
        %v242 = vpop.permute.xlu0 %241
        %243 = vset.pattern.permute.xlu0 0
        %244 = vperm.xlu0 %243, %v209
        %v245 = vpop.permute.xlu0 %244
        %vm246 = vcmp.eq.s32.totalorder %v239, %v242
        %vm247 = vcmp.eq.s32.totalorder %v239, %v245
        %v248 = vsel %vm246, %v206, 0.0
        %v249 = vsel %vm247, %v207, 0.0
        %v250 = vsel %vm219, %v248, 0.0
        %251 = vadd.xlane.f32.xlu0 %v250
        %v252 = vpop.xlane.xlu0 %251
        %v253 = vsel %vm219, %v249, 0.0
        %254 = vadd.xlane.f32.xlu0 %v253
        %v255 = vpop.xlane.xlu0 %254
        %v256 = vlog2.pop %v234
        %v257 = vmul.f32 %v256, 0.6931472
        %v258 = vlog2.pop %v237
        %v259 = vmul.f32 %v258, 0.6931472
        %v260 = vsub.f32 %v252, %v222
        %v261 = vsub.f32 %v255, %v225
        %v262 = vsub.f32 %v257, %v260
        %v263 = vsub.f32 %v259, %v261
        %v264 = vsel %vm217, %v262, 0.0
        %v265 = vsel %vm218, %v263, 0.0
        %vm266 = vcmask 7168
        %v267 = vsel %vm266, %v264, 0.0
        %v268 = vsel %vm266, %v265, 0.0
        %v269 = vadd.f32 %v267, %v268
        %270 = vadd.xlane.f32.xlu0 %v269
        %v271 = vpop.xlane.xlu0 %270
        %v272 = vrot.slane %v271, 4
        %v273 = vadd.f32 %v271, %v272
        %v274 = vrot.slane %v273, 2
        %v275 = vadd.f32 %v273, %v274
        %v276 = vrot.slane %v275, 1
        %v277 = vadd.f32 %v275, %v276
        %s278 = vtos %v277
        %s279 = smul.f32 %s278, 0.0009765625
        %v280 = vstv %s279
        %281 = vst [vmem:[%s177] sm:$0xff] %v280
        %s282 = sand.u32 %s76, 1
        %s283 = scalar_lea.sflag [#allocation3], %s282
        %s284 = sand.u32 %s76, 1
        %s285 = smul.addr %s284, 8
        %s286 = scalar_lea.vmem [#allocation2], %s285
        // Predicated region
        $region29: #{tpu_custom_call.1} parent=27 // pred_check
          %p287 = pneg %p86
        $region30: #{tpu_custom_call.1} parent=27 // pred_check_branch
          %289 = sbr.rel (%p287) target = $region32
        $region31: #{tpu_custom_call.1} parent=27 // pred_region
          %s291 = ssub.s32 128, 128
          %292 = vsyncadd %s283, %s291
          %s293 = smul.addr %s16, 128
          %s294 = scalar_lea.hbm %s2, %s293
          %s296 = sshll.u32 %s286, 4
          %s297 = int_to_ptr.vmem [resolvable:$true] %s296
          %299 = dma.vmem_to_hbm [thread:$0]  %s297, 128, %s294, %s283
        $region32: #{tpu_custom_call.1} parent=27 // pred_fallthru
          _
      $region28: #{tpu_custom_call.1} parent=5 // pred_fallthru
        _
      %p300 = scmp.le.s32.totalorder 2, %s11
      // Predicated region
      $region33: #{tpu_custom_call.1} parent=5 // pred_check
        %p301 = pneg %p300
      $region34: #{tpu_custom_call.1} parent=5 // pred_check_branch
        %303 = sbr.rel (%p301) target = $region36
      $region35: #{tpu_custom_call.1} parent=5 // pred_region
        %s304 = ssub.s32 %s11, 2
        // Predicated region
        $region37: #{tpu_custom_call.1} parent=35 // pred_check
          %p305 = pneg %p92
        $region38: #{tpu_custom_call.1} parent=35 // pred_check_branch
          %307 = sbr.rel (%p305) target = $region40
        $region39: #{tpu_custom_call.1} parent=35 // pred_region
          %s308 = sand.u32 %s77, 1
          %s309 = scalar_lea.sflag [#allocation3], %s308
          %s310 = sand.u32 %s77, 1
          %s311 = smul.addr %s310, 8
          %s312 = scalar_lea.vmem [#allocation2], %s311
          %313 = dma.done %s309, 128
        $region40: #{tpu_custom_call.1} parent=35 // pred_fallthru
          _
      $region36: #{tpu_custom_call.1} parent=5 // pred_fallthru
        _
    $region6: #{tpu_custom_call.1} parent=1 // loop_footer
      %s15 = sadd.s32 1, %s11
    $region7: #{tpu_custom_call.1} parent=1 // loop_footer_branch
      %10 = sbr.rel target = $region3
    $region8: #{tpu_custom_call.1} parent=1 // loop_exit
      _
    %314 = vsyncpa [#allocation3], 1
    %s315 = scalar_lea.sflag [#allocation3], 1
    %316 = vsyncpa %s315, 1

</llo_original>
